<compile_context>
chip_gen: v5e
topology: v5e:2x2
jax: 0.10.0
libtpu: 0.0.40
codegen_flags: <defaults>
</compile_context>

<pallas_src>
import jax
import jax.numpy as jnp
from jax.experimental import pallas as pl
from jax.experimental.pallas import tpu as pltpu


def _biasfree_ln_kernel(x_ref, w_ref, o_ref):
    # x_ref: (C, T)  — C on sublanes, T tokens on lanes.
    # w_ref: (C, 1)  — per-channel scale (f32), broadcast across lanes.
    x = x_ref[...].astype(jnp.float32)
    c = x.shape[0]
    inv_c = 1.0 / c
    mu = jnp.sum(x, axis=0, keepdims=True) * inv_c            # (1, T)
    d = x - mu
    var = jnp.sum(d * d, axis=0, keepdims=True) * inv_c       # (1, T), biased (unbiased=False)
    inv = jax.lax.rsqrt(var + 1e-5)                            # (1, T), f32 stats throughout
    w = w_ref[...]                                             # (C, 1), f32

    if o_ref.dtype == jnp.bfloat16:
        # bf16 I/O: scale in packed bf16 (only the final product rounds to bf16,
        # which the store does anyway); avoids a full-tile f32->bf16 cast.
        o_ref[...] = (x_ref[...].astype(jnp.bfloat16)
                      * inv.astype(jnp.bfloat16)
                      * w.astype(jnp.bfloat16))
    else:
        o_ref[...] = (x * inv * w).astype(o_ref.dtype)


def _round_up(x, m):
    return -(-x // m) * m


def _pick_tile_hw(hw, c, itemsize, vmem_budget_bytes=12 << 20):
    """Pick the lane-tile width.

    Per grid step, live VMEM is roughly:
      2 (double buffer) * 2 (in + out) * C*tile*itemsize        # pipelined blocks
      + ~3 * C*tile*4                                           # f32 intermediates
    i.e. per lane-column: C * (4*itemsize + 12) bytes. A 12 MiB budget stays under
    the default scoped VMEM on v5e (16 MiB) and v6e/v7x (32 MiB) with headroom.
    """
    per_lane = c * (4 * itemsize + 12)
    max_tile = ((vmem_budget_bytes // per_lane) // 128) * 128
    max_tile = max(128, min(max_tile, 2048))   # roofline saturates by ~512-1024 lanes

    if hw <= 128:
        return hw                               # single full-width block (legal)

    # Aim for >=4 HW tiles (pipelining + work for v7x's second TensorCore).
    target = min(max_tile, _round_up(pl.cdiv(hw, 4), 128))
    target = max(128, min(target, hw))

    # Prefer a multiple-of-128 tile that divides hw exactly -> no masked tail store.
    t = (target // 128) * 128
    while t >= 128:
        if hw % t == 0:
            return t
        t -= 128
    return min(target, hw)                      # ragged tail handled by cdiv grid


def biasfree_layernorm_nchw(x_nchw, weight):
    """BiasFree_LayerNorm over the channel dim of an NCHW tensor
    (matches Ufuser's to_3d -> LayerNorm -> to_4d usage) with zero transposes."""
    b, c, h, w = x_nchw.shape
    hw = h * w
    itemsize = jnp.dtype(x_nchw.dtype).itemsize

    x3 = x_nchw.reshape(b, c, hw)                    # free reshape, layout preserved
    w3 = weight.reshape(1, c, 1).astype(jnp.float32)  # keep learned scale in f32

    tile = _pick_tile_hw(hw, c, itemsize)
    grid = (b, pl.cdiv(hw, tile))

    n_elem = b * c * hw
    cost = pl.CostEstimate(
        flops=7 * n_elem,                       # sub, square, 2 sum-adds, scale, 2 muls
        transcendentals=b * hw,                 # rsqrt per token
        bytes_accessed=2 * n_elem * itemsize + c * 4,
    )

    out = pl.pallas_call(
        _biasfree_ln_kernel,
        out_shape=jax.ShapeDtypeStruct((b, c, hw), x_nchw.dtype),
        grid_spec=pltpu.PrefetchScalarGridSpec(
            num_scalar_prefetch=0,
            grid=grid,
            in_specs=[
                pl.BlockSpec((pl.Squeezed(), c, tile), lambda bi, ti: (bi, 0, ti)),
                pl.BlockSpec((pl.Squeezed(), c, 1), lambda bi, ti: (0, 0, 0)),
            ],
            out_specs=pl.BlockSpec((pl.Squeezed(), c, tile), lambda bi, ti: (bi, 0, ti)),
        ),
        compiler_params=pltpu.CompilerParams(
            dimension_semantics=("parallel", "parallel"),
        ),
        cost_estimate=cost,
    )(x3, w3)

    return out.reshape(b, c, h, w)


def _reference(x_nchw, weight):
    # Pure-JAX reference mirroring the PyTorch module (channels-last view), f32.
    x = jnp.transpose(x_nchw.astype(jnp.float32), (0, 2, 3, 1))
    sigma = jnp.var(x, axis=-1, keepdims=True)            # unbiased=False
    y = x / jnp.sqrt(sigma + 1e-5) * weight.astype(jnp.float32)
    return jnp.transpose(y, (0, 3, 1, 2))


if __name__ == "__main__":
    key = jax.random.PRNGKey(0)
    B, C, H, W = 2, 4, 16, 16
    x = jax.random.normal(key, (B, C, H, W), dtype=jnp.float32)
    # Deterministic parameter init: nn.Parameter(torch.ones(C))
    weight = jnp.ones((C,), dtype=jnp.float32)

    # f32 path
    out = biasfree_layernorm_nchw(x, weight)
    out = jax.block_until_ready(out)
    ref = _reference(x, weight)
    assert out.shape == (B, C, H, W)
    assert jnp.allclose(out, ref, atol=1e-5, rtol=1e-5), "f32 mismatch vs reference"

    # bf16 I/O path (stats still f32 in-kernel; only the final product rounds)
    x_bf16 = x.astype(jnp.bfloat16)
    out_bf16 = biasfree_layernorm_nchw(x_bf16, weight)
    out_bf16 = jax.block_until_ready(out_bf16)
    ref_bf16 = _reference(x_bf16, weight)
    assert out_bf16.dtype == jnp.bfloat16
    assert jnp.allclose(out_bf16.astype(jnp.float32), ref_bf16,
                        atol=5e-2, rtol=5e-2), "bf16 mismatch vs reference"

    print("KERNEL_OK")
</pallas_src>

<mosaic_0001>
module attributes {stable_mosaic.version = 11 : i64} {
  func.func @_biasfree_ln_kernel(%arg0: i32, %arg1: i32, %arg2: memref<1x4x128xf32, #tpu.memory_space<vmem>>, %arg3: memref<1x4x1xf32, #tpu.memory_space<vmem>>, %arg4: memref<1x4x128xf32, #tpu.memory_space<vmem>>) attributes {dimension_semantics = [#tpu.dimension_semantics<parallel>, #tpu.dimension_semantics<parallel>], iteration_bounds = array<i64: 2, 2>, scalar_prefetch = 0 : i64, scratch_operands = 0 : i64, tpu.core_type = #tpu.core_type<tc>, window_params = [{transform_indices = @transform_0, window_bounds = array<i64: 1, 4, 128>}, {pipeline_mode = #tpu.pipeline_mode<synchronous>, transform_indices = @transform_1, window_bounds = array<i64: 1, 4, 1>}, {transform_indices = @transform_2, window_bounds = array<i64: 1, 4, 128>}]} {
    %c0 = arith.constant 0 : index
    %c0_0 = arith.constant 0 : index
    %c0_1 = arith.constant 0 : index
    %0 = vector.load %arg2[%c0, %c0_0, %c0_1] : memref<1x4x128xf32, #tpu.memory_space<vmem>>, vector<1x4x128xf32>
    %1 = vector.shape_cast %0 : vector<1x4x128xf32> to vector<4x128xf32>
    %cst = arith.constant dense<0.000000e+00> : vector<128xf32>
    %2 = vector.multi_reduction <add>, %1, %cst [0] : vector<4x128xf32> to vector<128xf32>
    %3 = vector.shape_cast %2 : vector<128xf32> to vector<1x128xf32>
    %cst_2 = arith.constant 2.500000e-01 : f32
    %4 = vector.broadcast %cst_2 : f32 to vector<1x128xf32>
    %5 = arith.mulf %3, %4 : vector<1x128xf32>
    %6 = vector.broadcast %5 : vector<1x128xf32> to vector<4x128xf32>
    %7 = arith.subf %1, %6 : vector<4x128xf32>
    %8 = arith.mulf %7, %7 : vector<4x128xf32>
    %cst_3 = arith.constant dense<0.000000e+00> : vector<128xf32>
    %9 = vector.multi_reduction <add>, %8, %cst_3 [0] : vector<4x128xf32> to vector<128xf32>
    %10 = vector.shape_cast %9 : vector<128xf32> to vector<1x128xf32>
    %cst_4 = arith.constant 2.500000e-01 : f32
    %11 = vector.broadcast %cst_4 : f32 to vector<1x128xf32>
    %12 = arith.mulf %10, %11 : vector<1x128xf32>
    %cst_5 = arith.constant 9.99999974E-6 : f32
    %13 = vector.broadcast %cst_5 : f32 to vector<1x128xf32>
    %14 = arith.addf %12, %13 : vector<1x128xf32>
    %15 = math.rsqrt %14 : vector<1x128xf32>
    %c0_6 = arith.constant 0 : index
    %c0_7 = arith.constant 0 : index
    %c0_8 = arith.constant 0 : index
    %16 = vector.load %arg3[%c0_6, %c0_7, %c0_8] : memref<1x4x1xf32, #tpu.memory_space<vmem>>, vector<1x4x1xf32>
    %17 = vector.shape_cast %16 : vector<1x4x1xf32> to vector<4x1xf32>
    %18 = vector.broadcast %15 : vector<1x128xf32> to vector<4x128xf32>
    %19 = arith.mulf %1, %18 : vector<4x128xf32>
    %20 = vector.broadcast %17 : vector<4x1xf32> to vector<4x128xf32>
    %21 = arith.mulf %19, %20 : vector<4x128xf32>
    %c0_9 = arith.constant 0 : index
    %c0_10 = arith.constant 0 : index
    %c0_11 = arith.constant 0 : index
    %22 = vector.load %arg4[%c0_9, %c0_10, %c0_11] : memref<1x4x128xf32, #tpu.memory_space<vmem>>, vector<1x4x128xf32>
    %23 = vector.shape_cast %22 : vector<1x4x128xf32> to vector<4x128xf32>
    %24 = vector.shape_cast %21 : vector<4x128xf32> to vector<1x4x128xf32>
    tpu.vector_store %arg4[%c0_9, %c0_10, %c0_11], %24 {strides = array<i32>} : memref<1x4x128xf32, #tpu.memory_space<vmem>>, vector<1x4x128xf32>,
    return
  }
  func.func @transform_0(%arg0: i32, %arg1: i32) -> (i32, i32, i32) {
    %c0_i32 = arith.constant 0 : i32
    %c0_i32_0 = arith.constant 0 : i32
    return %arg0, %c0_i32, %arg1 : i32, i32, i32
  }
  func.func @transform_1(%arg0: i32, %arg1: i32) -> (i32, i32, i32) {
    %c0_i32 = arith.constant 0 : i32
    %c0_i32_0 = arith.constant 0 : i32
    %c0_i32_1 = arith.constant 0 : i32
    %c0_i32_2 = arith.constant 0 : i32
    return %c0_i32, %c0_i32_0, %c0_i32_1 : i32, i32, i32
  }
  func.func @transform_2(%arg0: i32, %arg1: i32) -> (i32, i32, i32) {
    %c0_i32 = arith.constant 0 : i32
    %c0_i32_0 = arith.constant 0 : i32
    return %arg0, %c0_i32, %arg1 : i32, i32, i32
  }
}

</mosaic_0001>

<llo_original>
// kernel: tpu_custom_call.1
$region0: #{tpu_custom_call.1}
  #allocation0 [shape = 'u32[]', space=smem, size = 0x4, offset = 0x4, fixed_abs, tag = 'smem constant byte address 0x4 - core index']
  #allocation1 [shape = 'u32[72,128]{1,0:T(1,128)}', space=vmem, size = 0x9000, scoped, tag = 'internal scratch']
  %s0 = inlined_call_operand.hbm [shape: f32[2,4,256], index: 0, kind: input, shape index: {}]
  %s1 = inlined_call_operand.vmem [shape: f32[1,4,1], index: 1, kind: input, shape index: {}]
  %s2 = inlined_call_operand.hbm [shape: f32[2,4,256], index: 2, kind: output, shape index: {}]
  %s3 = sld [smem:[#allocation0]]
  $region45: #{tpu_custom_call.1} parent=0
    _
  %s5 = ssub.s32 1, %s3
  %s6 = scalar_select 0, %s5, %s3
  $region1: #{tpu_custom_call.1} parent=0
    #allocation2 [shape = 'u8[4096]{0}', space=vmem, size = 0x1000, scoped, tag = 'input window, operand 0']
    #allocation3 [shape = 's32[2]{0}', space=sflag, size = 0x8, scoped, tag = 'scoped memory for tpu_custom_call.1']
    #allocation4 [shape = 's32[2]{0}', space=sflag, size = 0x8, scoped, tag = 'scoped memory for tpu_custom_call.1']
    #allocation5 [shape = 'u8[4096]{0}', space=vmem, size = 0x1000, scoped, tag = 'output window, operand 0']
    %7 = vsyncpa [#allocation3], 0
    %s8 = scalar_lea.sflag [#allocation3], 1
    %9 = vsyncpa %s8, 0
    %10 = vsyncpa [#allocation4], 0
    %s11 = scalar_lea.sflag [#allocation4], 1
    %12 = vsyncpa %s11, 0
    loop: start=0, step=1, limit=6
    $region2: #{tpu_custom_call.1} parent=1 // loop_pre_header
      _
    $region3: #{tpu_custom_call.1} parent=1 // loop_header
      %s14 = sphi 0, %s18
      %p15 = scmp.ge.s32.totalorder %s14, 6
      %s21 = sphi 0, %s33
      %s22 = sphi 0, %s29
      %s23 = sphi 0, %s21
      %s24 = sphi 0, %s22
      %s25 = sphi 0, %s23
      %s26 = sphi 0, %s24
      %s38 = sphi 0, %s40
      %s41 = sphi 0, %s38
      %s42 = sphi 0, %s41
      %s58 = sphi 0, %s42
      %s62 = sphi 0, %s62
      %s64 = sphi 0, %s62
      %s65 = sphi 0, %s64
      %s79 = sphi 0, %s65
      %s87 = sphi 0, %s89
      %s90 = sphi 0, %s87
      %s91 = sphi 0, %s90
      %s107 = sphi 0, %s91
    $region4: #{tpu_custom_call.1} parent=1 // loop_header_branch
      %17 = sbr.rel (%p15) target = $region8
    $region5: #{tpu_custom_call.1} parent=1 // loop_body
      %s19 = ssub.s32 %s14, 1
      %s20 = ssub.s32 %s14, 2
      %s27 = sadd.s32 1, %s22
      %p28 = scmp.ge.s32.totalorder %s27, 2
      %s29 = scalar_select %p28, 0, %s27
      %s30 = sadd.s32 1, %s21
      %s31 = scalar_select %p28, %s30, %s21
      %p32 = scmp.ge.s32.totalorder %s31, 2
      %s33 = scalar_select %p32, 0, %s31
      %s34 = ssub.s32 %s21, %s33
      %s35 = ssub.s32 %s22, %s29
      %s36 = sor.u32 %s34, %s35
      %p37 = scmp.eq.s32.totalorder %s36, 0
      %s39 = sadd.s32 %s38, 1
      %s40 = scalar_select %p37, %s38, %s39
      %p43 = pneg %p37
      %p44 = scmp.eq.s32.totalorder %s14, 3
      %p45 = por %p43, %p44
      %p46 = scmp.ne.s32.totalorder %s38, %s41
      %p47 = scmp.eq.s32.totalorder %s14, 0
      %p48 = por %p46, %p47
      %p49 = scmp.ne.s32.totalorder %s38, %s41
      %p50 = scmp.eq.s32.totalorder %s19, 3
      %p51 = por %p49, %p50
      %p52 = scmp.ne.s32.totalorder %s41, %s42
      %p53 = scmp.eq.s32.totalorder %s19, 0
      %p54 = por %p52, %p53
      %p55 = scmp.ne.s32.totalorder %s41, %s42
      %p56 = scmp.eq.s32.totalorder %s20, 3
      %p57 = por %p55, %p56
      %p59 = scmp.ne.s32.totalorder %s42, %s58
      %p60 = scmp.eq.s32.totalorder %s20, 0
      %p61 = por %p59, %p60
      %s63 = sadd.s32 %s62, 1
      %p66 = scmp.eq.s32.totalorder %s14, 3
      %p67 = scmp.ne.s32.totalorder %s62, %s64
      %p68 = scmp.eq.s32.totalorder %s14, 0
      %p69 = por %p67, %p68
      %p70 = scmp.ne.s32.totalorder %s62, %s64
      %p71 = scmp.eq.s32.totalorder %s19, 3
      %p72 = por %p70, %p71
      %p73 = scmp.ne.s32.totalorder %s64, %s65
      %p74 = scmp.eq.s32.totalorder %s19, 0
      %p75 = por %p73, %p74
      %p76 = scmp.ne.s32.totalorder %s64, %s65
      %p77 = scmp.eq.s32.totalorder %s20, 3
      %p78 = por %p76, %p77
      %p80 = scmp.ne.s32.totalorder %s65, %s79
      %p81 = scmp.eq.s32.totalorder %s20, 0
      %p82 = por %p80, %p81
      %s83 = ssub.s32 %s21, %s33
      %s84 = ssub.s32 %s22, %s29
      %s85 = sor.u32 %s83, %s84
      %p86 = scmp.eq.s32.totalorder %s85, 0
      %s88 = sadd.s32 %s87, 1
      %s89 = scalar_select %p86, %s87, %s88
      %p92 = pneg %p86
      %p93 = scmp.eq.s32.totalorder %s14, 3
      %p94 = por %p92, %p93
      %p95 = scmp.ne.s32.totalorder %s87, %s90
      %p96 = scmp.eq.s32.totalorder %s14, 0
      %p97 = por %p95, %p96
      %p98 = scmp.ne.s32.totalorder %s87, %s90
      %p99 = scmp.eq.s32.totalorder %s19, 3
      %p100 = por %p98, %p99
      %p101 = scmp.ne.s32.totalorder %s90, %s91
      %p102 = scmp.eq.s32.totalorder %s19, 0
      %p103 = por %p101, %p102
      %p104 = scmp.ne.s32.totalorder %s90, %s91
      %p105 = scmp.eq.s32.totalorder %s20, 3
      %p106 = por %p104, %p105
      %p108 = scmp.ne.s32.totalorder %s91, %s107
      %p109 = scmp.eq.s32.totalorder %s20, 0
      %p110 = por %p108, %p109
      %p111 = scmp.le.s32.totalorder 1, %s14
      %p112 = scmp.lt.s32.totalorder %s14, 5
      %p113 = pnand %p111, %p112
      %p114 = pneg %p113
      // Predicated region
      $region9: #{tpu_custom_call.1} parent=5 // pred_check
        _
      $region10: #{tpu_custom_call.1} parent=5 // pred_check_branch
        %116 = sbr.rel (%p113) target = $region12
      $region11: #{tpu_custom_call.1} parent=5 // pred_region
        %s117 = ssub.s32 %s14, 1
        // Predicated region
        $region13: #{tpu_custom_call.1} parent=11 // pred_check
          %p118 = pneg %p75
        $region14: #{tpu_custom_call.1} parent=11 // pred_check_branch
          %120 = sbr.rel (%p118) target = $region16
        $region15: #{tpu_custom_call.1} parent=11 // pred_region
          _
        $region16: #{tpu_custom_call.1} parent=11 // pred_fallthru
          _
      $region12: #{tpu_custom_call.1} parent=5 // pred_fallthru
        _
      %p121 = scmp.lt.s32.totalorder %s14, 4
      // Predicated region
      $region17: #{tpu_custom_call.1} parent=5 // pred_check
        %p122 = pneg %p121
      $region18: #{tpu_custom_call.1} parent=5 // pred_check_branch
        %124 = sbr.rel (%p122) target = $region20
      $region19: #{tpu_custom_call.1} parent=5 // pred_region
        // Predicated region
        $region21: #{tpu_custom_call.1} parent=19 // pred_check
          %p125 = pneg %p48
        $region22: #{tpu_custom_call.1} parent=19 // pred_check_branch
          %127 = sbr.rel (%p125) target = $region24
        $region23: #{tpu_custom_call.1} parent=19 // pred_region
          %s128 = sand.u32 %s38, 1
          %s129 = scalar_lea.sflag [#allocation3], %s128
          %s130 = sand.u32 %s38, 1
          %s131 = smul.addr %s130, 4
          %s132 = scalar_lea.vmem [#allocation2], %s131
          %134 = vsyncadd %s129, 0
          %s135 = smul.addr %s21, 2
          %s136 = sadd.s32 %s22, %s135
          %s137 = smul.addr %s136, 4
          %s138 = scalar_lea.hbm %s0, %s137
          %s140 = sshll.u32 %s138, 4
          %s141 = int_to_ptr.hbm [resolvable:$true] %s140
          %s142 = sshll.u32 %s132, 4
          %s143 = int_to_ptr.vmem [resolvable:$true] %s142
          %145 = dma.hbm_to_vmem [thread:$0]  %s141, 64, %s143, %s129
        $region24: #{tpu_custom_call.1} parent=19 // pred_fallthru
          _
      $region20: #{tpu_custom_call.1} parent=5 // pred_fallthru
        _
      %p146 = scmp.le.s32.totalorder 1, %s14
      %p147 = scmp.lt.s32.totalorder %s14, 5
      %p148 = pnand %p146, %p147
      %p149 = pneg %p148
      // Predicated region
      $region25: #{tpu_custom_call.1} parent=5 // pred_check
        _
      $region26: #{tpu_custom_call.1} parent=5 // pred_check_branch
        %151 = sbr.rel (%p148) target = $region28
      $region27: #{tpu_custom_call.1} parent=5 // pred_region
        %s152 = ssub.s32 %s14, 1
        %s153 = sand.u32 %s41, 1
        %s154 = scalar_lea.sflag [#allocation3], %s153
        %s155 = sand.u32 %s41, 1
        %s156 = smul.addr %s155, 4
        %s157 = scalar_lea.vmem [#allocation2], %s156
        // Predicated region
        $region29: #{tpu_custom_call.1} parent=27 // pred_check
          %p158 = pneg %p54
        $region30: #{tpu_custom_call.1} parent=27 // pred_check_branch
          %160 = sbr.rel (%p158) target = $region32
        $region31: #{tpu_custom_call.1} parent=27 // pred_region
          %162 = dma.done %s154, 64
        $region32: #{tpu_custom_call.1} parent=27 // pred_fallthru
          _
        %s163 = sand.u32 %s41, 1
        %s164 = scalar_lea.sflag [#allocation3], %s163
        %s165 = sand.u32 %s41, 1
        %s166 = smul.addr %s165, 4
        %s167 = scalar_lea.vmem [#allocation2], %s166
        %p168 = pneg %p54
        %p169 = pneg %p51
        %p170 = pneg %p75
        %p171 = pneg %p72
        %p172 = pneg %p103
        %p173 = pneg %p100
        %s174 = sand.u32 %s90, 1
        %s175 = scalar_lea.sflag [#allocation4], %s174
        %s176 = sand.u32 %s90, 1
        %s177 = smul.addr %s176, 4
        %s178 = scalar_lea.vmem [#allocation5], %s177
        %v179 = vld [vmem:[%s157] sm:$0xf]
        %vm180 = vcmask 1043456
        %v181 = vsel %vm180, %v179, 0.0
        %v182 = vrot.slane %v181, 4
        %v183 = vadd.f32 %v181, %v182
        %v184 = vrot.slane %v183, 2
        %v185 = vadd.f32 %v183, %v184
        %v186 = vrot.slane %v185, 1
        %v187 = vadd.f32 %v185, %v186
        %v188 = vmul.f32 %v187, 0.25
        %v189 = vsub.f32 %v179, %v188
        %v190 = vmul.f32 %v189, %v189
        %v191 = vsel %vm180, %v190, 0.0
        %v192 = vrot.slane %v191, 4
        %v193 = vadd.f32 %v191, %v192
        %v194 = vrot.slane %v193, 2
        %v195 = vadd.f32 %v193, %v194
        %v196 = vrot.slane %v195, 1
        %v197 = vadd.f32 %v195, %v196
        %v198 = vmul.f32 %v197, 0.25
        %v199 = vadd.f32 %v198, 1e-05
        %v200 = vrsqrt.pop %v199
        %v201 = vmul.f32 %v200, %v199
        %v202 = vmul.f32 %v201, %v200
        %v203 = vmul.f32 0.5, %v202
        %v204 = vsub.f32 1.5, %v203
        %v205 = vmul.f32 %v200, %v204
        %vm206 = vweird.f32 %v199
        %vm207 = vweird.f32 %v200
        %vm208 = vmor %vm206, %vm207
        %v209 = vsel %vm208, %v200, %v205
        %v210 = vld [vmem:[%s1] sm:$0xf]
        %v211 = vmul.f32 %v179, %v209
        %213 = vset.pattern.permute.xlu0 0
        %214 = vperm.xlu0 %213, %v210
        %v215 = vpop.permute.xlu0 %214
        %v217 = vmul.f32 %v211, %v215
        %218 = vst [vmem:[%s178] sm:$0xf] %v217
        %s219 = sand.u32 %s90, 1
        %s220 = scalar_lea.sflag [#allocation4], %s219
        %s221 = sand.u32 %s90, 1
        %s222 = smul.addr %s221, 4
        %s223 = scalar_lea.vmem [#allocation5], %s222
        // Predicated region
        $region33: #{tpu_custom_call.1} parent=27 // pred_check
          %p224 = pneg %p100
        $region34: #{tpu_custom_call.1} parent=27 // pred_check_branch
          %226 = sbr.rel (%p224) target = $region36
        $region35: #{tpu_custom_call.1} parent=27 // pred_region
          %228 = vsyncadd %s220, 0
          %s229 = smul.addr %s23, 2
          %s230 = sadd.s32 %s24, %s229
          %s231 = smul.addr %s230, 4
          %s232 = scalar_lea.hbm %s2, %s231
          %s234 = sshll.u32 %s223, 4
          %s235 = int_to_ptr.vmem [resolvable:$true] %s234
          %s236 = sshll.u32 %s232, 4
          %s237 = int_to_ptr.hbm [resolvable:$true] %s236
          %239 = dma.vmem_to_hbm [thread:$0]  %s235, 64, %s237, %s220
        $region36: #{tpu_custom_call.1} parent=27 // pred_fallthru
          _
      $region28: #{tpu_custom_call.1} parent=5 // pred_fallthru
        _
      %p240 = scmp.le.s32.totalorder 2, %s14
      // Predicated region
      $region37: #{tpu_custom_call.1} parent=5 // pred_check
        %p241 = pneg %p240
      $region38: #{tpu_custom_call.1} parent=5 // pred_check_branch
        %243 = sbr.rel (%p241) target = $region40
      $region39: #{tpu_custom_call.1} parent=5 // pred_region
        %s244 = ssub.s32 %s14, 2
        // Predicated region
        $region41: #{tpu_custom_call.1} parent=39 // pred_check
          %p245 = pneg %p106
        $region42: #{tpu_custom_call.1} parent=39 // pred_check_branch
          %247 = sbr.rel (%p245) target = $region44
        $region43: #{tpu_custom_call.1} parent=39 // pred_region
          %s248 = sand.u32 %s91, 1
          %s249 = scalar_lea.sflag [#allocation4], %s248
          %s250 = sand.u32 %s91, 1
          %s251 = smul.addr %s250, 4
          %s252 = scalar_lea.vmem [#allocation5], %s251
          %254 = dma.done %s249, 64
        $region44: #{tpu_custom_call.1} parent=39 // pred_fallthru
          _
      $region40: #{tpu_custom_call.1} parent=5 // pred_fallthru
        _
    $region6: #{tpu_custom_call.1} parent=1 // loop_footer
      %s18 = sadd.s32 1, %s14
    $region7: #{tpu_custom_call.1} parent=1 // loop_footer_branch
      %13 = sbr.rel target = $region3
    $region8: #{tpu_custom_call.1} parent=1 // loop_exit
      _
    %255 = vsyncpa [#allocation3], 1
    %s256 = scalar_lea.sflag [#allocation3], 1
    %257 = vsyncpa %s256, 1
    %258 = vsyncpa [#allocation4], 1
    %s259 = scalar_lea.sflag [#allocation4], 1
    %260 = vsyncpa %s259, 1

</llo_original>
